<compile_context>
chip_gen: v5e
topology: v5e:2x2
jax: 0.10.0
libtpu: 0.0.40
codegen_flags: <defaults>
</compile_context>

<pallas_src>
import functools

import jax
import jax.numpy as jnp
from jax import lax
from jax.experimental import pallas as pl
from jax.experimental.pallas import tpu as pltpu

VMEM_LIMIT = 32 * 1024 * 1024  # safe scoped-VMEM budget on v5e/v6e/v7x


def _round_up(x, m):
    return ((x + m - 1) // m) * m


def _pick_block(n):
    # Largest of 512/256/128 that still yields >= 2 row tiles (megacore balance on
    # dual-TensorCore chips); big tiles amortize the ~0.35us per-grid-step overhead.
    for b in (512, 256, 128):
        if n >= 2 * b:
            return b
    return 128


# ---------------------------------------------------------------------------
# 1) adjacency prep: f32 -> int8 (0/1 exact) + out-degree column sums, one pass
# ---------------------------------------------------------------------------
def prep_kernel(adj_ref, adj8_ref, outd_ref, acc_ref):
    i = pl.program_id(1)                         # dst/row tile (inner, reduction axis)
    a = adj_ref[...]                             # (TB, TB) f32 0/1 tile
    adj8_ref[...] = a.astype(jnp.int8)           # halves the dominant downstream stream

    @pl.when(i == 0)
    def _():
        acc_ref[...] = jnp.zeros_like(acc_ref)

    acc_ref[...] += jnp.sum(a, axis=0, keepdims=True)   # column sums = out-degree

    @pl.when(i == pl.num_programs(1) - 1)
    def _():
        outd_ref[...] = acc_ref[...]


# ---------------------------------------------------------------------------
# 2) Hs = (X @ W_pack) * R_pack, plus a constant-1 degree lane
# ---------------------------------------------------------------------------
def xw_pack_kernel(x_ref, w_ref, r_ref, hs_ref, *, deg_lane):
    h = jnp.dot(x_ref[...], w_ref[...], preferred_element_type=jnp.float32)
    hs = h * r_ref[...]
    lane = lax.broadcasted_iota(jnp.int32, hs.shape, 1)
    hs = jnp.where(lane == deg_lane, 1.0, hs)    # ones lane -> in-degree via the agg matmul
    hs_ref[...] = hs.astype(jnp.bfloat16)


# ---------------------------------------------------------------------------
# 3) aggregation: acc += adj_int8 @ Hs ; finalize = c-combine + in-norm + bias
# ---------------------------------------------------------------------------
def agg_kernel(adj_ref, hs_ref, c_ref, psel_ref, bias_ref, z_ref, zb_ref, acc_ref,
               *, block, deg_lane, hs_resident):
    k = pl.program_id(1)

    @pl.when(k == 0)
    def _():
        acc_ref[...] = jnp.zeros_like(acc_ref)

    adj = adj_ref[...].astype(jnp.bfloat16)      # int8 0/1 -> bf16 (exact), VPU widen
    if hs_resident:
        koff = pl.multiple_of(k * block, block)
        hs = hs_ref[pl.ds(koff, block), :]       # VMEM-resident Hs, sliced per src tile
    else:
        hs = hs_ref[...]
    acc_ref[...] += jnp.dot(adj, hs, preferred_element_type=jnp.float32)

    @pl.when(k == pl.num_programs(1) - 1)
    def _():
        acc = acc_ref[...]
        lane = lax.broadcasted_iota(jnp.int32, acc.shape, 1)
        deg = jnp.sum(jnp.where(lane == deg_lane, acc, 0.0), axis=1, keepdims=True)
        in_norm = lax.rsqrt(jnp.maximum(deg, 1.0))        # 'both' norm: in_deg^-0.5
        z = jnp.dot(acc * c_ref[...], psel_ref[...],
                    preferred_element_type=jnp.float32) * in_norm + bias_ref[...]
        z_ref[...] = z
        zb_ref[...] = z.astype(jnp.bfloat16)


# ---------------------------------------------------------------------------
# 4) inner-product decoder (identity activation): adj_rec = Z @ Z^T
# ---------------------------------------------------------------------------
def ipdec_kernel(zi_ref, zj_ref, out_ref):
    out_ref[...] = lax.dot_general(
        zi_ref[...], zj_ref[...],
        dimension_numbers=(((1,), (1,)), ((), ())),
        preferred_element_type=jnp.float32).astype(out_ref.dtype)


def gcnae_alpha_forward(x, w, adj, node_id, alpha, bias, gene_num):
    """Forward pass of GCNAEAlpha (single block, inference).

    x       : (N, in_feats) f32 node features
    w       : (in_feats, n_hidden) f32 GraphConv weight
    adj     : (N, N) f32 binary adjacency, adj[dst, src]
    node_id : (N,) int32, genes >= 0 (id in [0, gene_num)), cells < 0
    alpha   : (gene_num + 2, 1) f32 learnable per-edge-class weights
    bias    : (1, n_hidden) f32
    returns (adj_rec (N, N) f32, z (N, n_hidden) f32)  -- matches module's (adj_rec, x)
    """
    # TODO(synk): nn.Dropout / F.dropout are stochastic training-time ops; identity here.
    N, in_feats = x.shape
    n_hidden = w.shape[1]

    block = _pick_block(N)
    n_pad = _round_up(N, block)
    pad_n = n_pad - N
    m = n_pad // block

    hid_pack = _round_up(3 * n_hidden + 1, 128)   # 3 packed segments + degree lane
    hid_out = _round_up(n_hidden, 128)            # lane-dense Z slab
    deg_lane = 3 * n_hidden

    # ---- kernel 1: adjacency int8 + out-degree (single N^2 pass) ----
    adj_f32 = adj.astype(jnp.float32)
    if pad_n:
        adj_f32 = jnp.pad(adj_f32, ((0, pad_n), (0, pad_n)))
    adj8, outd = pl.pallas_call(
        prep_kernel,
        out_shape=(jax.ShapeDtypeStruct((n_pad, n_pad), jnp.int8),
                   jax.ShapeDtypeStruct((1, n_pad), jnp.float32)),
        grid_spec=pltpu.PrefetchScalarGridSpec(
            num_scalar_prefetch=0,
            grid=(m, m),                                      # (src/col tiles, dst/row tiles)
            in_specs=[pl.BlockSpec((block, block), lambda kk, ii: (ii, kk))],
            out_specs=[pl.BlockSpec((block, block), lambda kk, ii: (ii, kk)),
                       pl.BlockSpec((1, block), lambda kk, ii: (0, kk))],
            scratch_shapes=[pltpu.VMEM((1, block), jnp.float32)]),
        compiler_params=pltpu.CompilerParams(
            dimension_semantics=("parallel", "arbitrary"),
            vmem_limit_bytes=VMEM_LIMIT),
        cost_estimate=pl.CostEstimate(
            flops=n_pad * n_pad,
            transcendentals=0,
            bytes_accessed=5 * n_pad * n_pad + 4 * n_pad),
    )(adj_f32)

    # ---- O(N) graph metadata: exact rank-3 factorization of alpha_e * out_norm ----
    node_id_p = node_id.astype(jnp.int32)
    if pad_n:
        node_id_p = jnp.pad(node_id_p, (0, pad_n), constant_values=-1)
    g = (node_id_p >= 0).astype(jnp.float32)                          # gene indicator
    a_node = jnp.where(node_id_p >= 0, alpha[jnp.maximum(node_id_p, 0), 0], 0.0)
    a_gg = alpha[gene_num, 0]                                         # gene -> gene class
    a_cc = alpha[gene_num + 1, 0]                                     # cell -> cell class
    out_norm = jnp.maximum(outd[0], 1.0) ** -0.5                      # (n_pad,)

    # per-src factors (folded into Hs) and per-dst factors (finalize combine)
    r1 = (g * a_node + (1.0 - g) * a_cc) * out_norm
    r2 = g * a_gg * out_norm
    r3 = (1.0 - g) * out_norm
    c1 = 1.0 - g
    c2 = g
    c3 = g * a_node

    def _pack(v1, v2, v3):
        seg = jnp.repeat(jnp.stack([v1, v2, v3], axis=1), n_hidden, axis=1)
        return jnp.pad(seg, ((0, 0), (0, hid_pack - 3 * n_hidden))).astype(jnp.float32)

    R_pack = _pack(r1, r2, r3)                                        # (n_pad, hid_pack)
    C_pack = _pack(c1, c2, c3)                                        # (n_pad, hid_pack)

    w3 = jnp.concatenate([w, w, w], axis=1)                           # 3 copies of W
    W_pack = jnp.pad(w3, ((0, 0), (0, hid_pack - 3 * n_hidden))).astype(jnp.bfloat16)
    rows = jnp.arange(3 * n_hidden)
    cols = jnp.tile(jnp.arange(n_hidden), 3)
    psel = jnp.zeros((hid_pack, hid_out), jnp.float32).at[rows, cols].set(1.0)
    bias_p = jnp.pad(bias.astype(jnp.float32), ((0, 0), (0, hid_out - n_hidden)))

    x_p = x
    if pad_n:
        x_p = jnp.pad(x_p, ((0, pad_n), (0, 0)))
    x_p = x_p.astype(jnp.bfloat16)

    # ---- kernel 2: Hs = (X @ W_pack) * R_pack (+ degree lane) ----
    hs = pl.pallas_call(
        functools.partial(xw_pack_kernel, deg_lane=deg_lane),
        out_shape=jax.ShapeDtypeStruct((n_pad, hid_pack), jnp.bfloat16),
        grid_spec=pltpu.PrefetchScalarGridSpec(
            num_scalar_prefetch=0,
            grid=(m,),
            in_specs=[pl.BlockSpec((block, in_feats), lambda i: (i, 0)),
                      pl.BlockSpec((in_feats, hid_pack), lambda i: (0, 0)),
                      pl.BlockSpec((block, hid_pack), lambda i: (i, 0))],
            out_specs=pl.BlockSpec((block, hid_pack), lambda i: (i, 0))),
        compiler_params=pltpu.CompilerParams(
            dimension_semantics=("parallel",),
            vmem_limit_bytes=VMEM_LIMIT),
        cost_estimate=pl.CostEstimate(
            flops=2 * n_pad * in_feats * hid_pack + 2 * n_pad * hid_pack,
            transcendentals=0,
            bytes_accessed=2 * n_pad * in_feats + 2 * in_feats * hid_pack
                           + 6 * n_pad * hid_pack),
    )(x_p, W_pack, R_pack)

    # ---- kernel 3: Z = in_norm * c-combine(adj_int8 @ Hs) + bias ----
    hs_bytes = 2 * n_pad * hid_pack
    hs_resident = hs_bytes <= 8 * 1024 * 1024      # keep (2x-buffered) Hs well under VMEM
    if hs_resident:
        hs_spec = pl.BlockSpec((n_pad, hid_pack), lambda i, k: (0, 0))   # resident, read once
    else:
        hs_spec = pl.BlockSpec((block, hid_pack), lambda i, k: (k, 0))   # streamed fallback

    z_f32, z_bf16 = pl.pallas_call(
        functools.partial(agg_kernel, block=block, deg_lane=deg_lane,
                          hs_resident=hs_resident),
        out_shape=(jax.ShapeDtypeStruct((n_pad, hid_out), jnp.float32),
                   jax.ShapeDtypeStruct((n_pad, hid_out), jnp.bfloat16)),
        grid_spec=pltpu.PrefetchScalarGridSpec(
            num_scalar_prefetch=0,
            grid=(m, m),                                      # (dst row tiles, src reduction tiles)
            in_specs=[pl.BlockSpec((block, block), lambda i, k: (i, k)),     # int8 adjacency
                      hs_spec,                                               # packed Hs
                      pl.BlockSpec((block, hid_pack), lambda i, k: (i, 0)),  # per-dst c factors
                      pl.BlockSpec((hid_pack, hid_out), lambda i, k: (0, 0)),  # segment-sum matrix
                      pl.BlockSpec((1, hid_out), lambda i, k: (0, 0))],      # bias
            out_specs=[pl.BlockSpec((block, hid_out), lambda i, k: (i, 0)),
                       pl.BlockSpec((block, hid_out), lambda i, k: (i, 0))],
            scratch_shapes=[pltpu.VMEM((block, hid_pack), jnp.float32)]),
        compiler_params=pltpu.CompilerParams(
            dimension_semantics=("parallel", "arbitrary"),
            vmem_limit_bytes=VMEM_LIMIT),
        cost_estimate=pl.CostEstimate(
            flops=2 * n_pad * n_pad * hid_pack + 2 * n_pad * hid_pack * hid_out,
            transcendentals=n_pad,
            bytes_accessed=n_pad * n_pad
                           + (hs_bytes if hs_resident else m * hs_bytes)
                           + 4 * n_pad * hid_pack + 6 * n_pad * hid_out),
    )(adj8, hs, C_pack, psel, bias_p)

    # ---- kernel 4: adj_rec = Z @ Z^T, written directly at (N, N) ----
    adj_rec = pl.pallas_call(
        ipdec_kernel,
        out_shape=jax.ShapeDtypeStruct((N, N), jnp.float32),
        grid_spec=pltpu.PrefetchScalarGridSpec(
            num_scalar_prefetch=0,
            grid=(m, m),
            in_specs=[pl.BlockSpec((block, hid_out), lambda i, j: (i, 0)),
                      pl.BlockSpec((block, hid_out), lambda i, j: (j, 0))],
            out_specs=pl.BlockSpec((block, block), lambda i, j: (i, j))),
        compiler_params=pltpu.CompilerParams(
            dimension_semantics=("parallel", "parallel"),
            vmem_limit_bytes=VMEM_LIMIT),
        cost_estimate=pl.CostEstimate(
            flops=2 * n_pad * n_pad * hid_out,
            transcendentals=0,
            bytes_accessed=4 * m * n_pad * hid_out + 4 * N * N),
    )(z_bf16, z_bf16)

    z = z_f32[:N, :n_hidden]
    # module returns (adj_rec, x) where x is the encoded embedding z
    return adj_rec, z


if __name__ == "__main__":
    key = jax.random.PRNGKey(0)
    N = 512          # nodes (src node set == dst node set); block=256 -> 2x2 grids
    gene_num = 100   # first 100 nodes are genes (id 0..99), rest are cells (id = -1)
    in_feats = 64
    n_hidden = 8

    k1, k2, k3, k4 = jax.random.split(key, 4)
    x = jax.random.normal(k1, (N, in_feats), dtype=jnp.float32)

    # GraphConv xavier-uniform weight, zero bias. alpha uses non-uniform positive values
    # so the per-edge-class selection logic is exercised by the numerical check.
    limit = (6.0 / (in_feats + n_hidden)) ** 0.5
    w = jax.random.uniform(k2, (in_feats, n_hidden),
                           minval=-limit, maxval=limit, dtype=jnp.float32)
    bias = jnp.zeros((1, n_hidden), jnp.float32)
    alpha = 0.5 + jax.random.uniform(k4, (gene_num + 2, 1), dtype=jnp.float32)

    # synthetic graph: random edges + self-loops (avoids DGL's 0-in-degree check)
    adj = (jax.random.uniform(k3, (N, N)) < 0.05).astype(jnp.float32)
    adj = jnp.maximum(adj, jnp.eye(N, dtype=jnp.float32))       # adj[dst, src]

    node_id = jnp.concatenate([jnp.arange(gene_num, dtype=jnp.int32),
                               -jnp.ones((N - gene_num,), jnp.int32)])

    adj_rec, z = jax.block_until_ready(
        gcnae_alpha_forward(x, w, adj, node_id, alpha, bias, gene_num))

    # ---- pure-JAX reference (WeightedGraphConvAlpha + InnerProductDecoder) ----
    # bf16-rounded x/w so the check measures kernel correctness, not fp quantization.
    xb = x.astype(jnp.bfloat16).astype(jnp.float32)
    wb = w.astype(jnp.bfloat16).astype(jnp.float32)
    out_norm = jnp.maximum(adj.sum(0), 1.0) ** -0.5
    in_norm = jnp.maximum(adj.sum(1), 1.0) ** -0.5
    h_ref = (xb * out_norm[:, None]) @ wb                       # feat_src * norm then matmul
    src_id = node_id[None, :]
    dst_id = node_id[:, None]
    alpha_idx = jnp.full((N, N), gene_num + 1, dtype=jnp.int32)
    alpha_idx = jnp.where((src_id >= 0) & (dst_id < 0),
                          jnp.broadcast_to(src_id, (N, N)), alpha_idx)
    alpha_idx = jnp.where((dst_id >= 0) & (src_id < 0),
                          jnp.broadcast_to(dst_id, (N, N)), alpha_idx)
    alpha_idx = jnp.where((dst_id >= 0) & (src_id >= 0), gene_num, alpha_idx)
    z_ref = ((adj * alpha[alpha_idx, 0]) @ h_ref) * in_norm[:, None] + bias
    adj_rec_ref = z_ref @ z_ref.T

    assert z.shape == (N, n_hidden) and adj_rec.shape == (N, N)
    assert jnp.allclose(z, z_ref, atol=2e-2, rtol=2e-2)
    assert jnp.allclose(adj_rec, adj_rec_ref, atol=5e-2, rtol=5e-2)
    print("KERNEL_OK")
</pallas_src>

<mosaic_0001>
module attributes {stable_mosaic.version = 11 : i64} {
  func.func @prep_kernel(%arg0: i32, %arg1: i32, %arg2: memref<256x256xf32, #tpu.memory_space<vmem>>, %arg3: memref<256x256xi8, #tpu.memory_space<vmem>>, %arg4: memref<1x256xf32, #tpu.memory_space<vmem>>, %arg5: memref<1x256xf32, #tpu.memory_space<vmem>>) attributes {dimension_semantics = [#tpu.dimension_semantics<parallel>, #tpu.dimension_semantics<arbitrary>], iteration_bounds = array<i64: 2, 2>, scalar_prefetch = 0 : i64, scratch_operands = 1 : i64, tpu.core_type = #tpu.core_type<tc>, window_params = [{transform_indices = @transform_0, window_bounds = array<i64: 256, 256>}, {transform_indices = @transform_1, window_bounds = array<i64: 256, 256>}, {transform_indices = @transform_2, window_bounds = array<i64: 1, 256>}]} {
    %c0 = arith.constant 0 : index
    %c0_0 = arith.constant 0 : index
    %0 = vector.load %arg2[%c0, %c0_0] : memref<256x256xf32, #tpu.memory_space<vmem>>, vector<256x256xf32>
    %1 = arith.fptosi %0 : vector<256x256xf32> to vector<256x256xi8>
    %c0_1 = arith.constant 0 : index
    %c0_2 = arith.constant 0 : index
    %2 = vector.load %arg3[%c0_1, %c0_2] : memref<256x256xi8, #tpu.memory_space<vmem>>, vector<256x256xi8>
    tpu.vector_store %arg3[%c0_1, %c0_2], %1 {strides = array<i32>} : memref<256x256xi8, #tpu.memory_space<vmem>>, vector<256x256xi8>,
    %c0_i32 = arith.constant 0 : i32
    %3 = arith.cmpi eq, %arg1, %c0_i32 : i32
    %4 = arith.extui %3 : i1 to i32
    %c0_i32_3 = arith.constant 0 : i32
    %5 = arith.cmpi ne, %4, %c0_i32_3 : i32
    scf.if %5 {
      %cst_9 = arith.constant 0.000000e+00 : f32
      %14 = vector.broadcast %cst_9 : f32 to vector<1x256xf32>
      %c0_10 = arith.constant 0 : index
      %c0_11 = arith.constant 0 : index
      %15 = vector.load %arg5[%c0_10, %c0_11] : memref<1x256xf32, #tpu.memory_space<vmem>>, vector<1x256xf32>
      tpu.vector_store %arg5[%c0_10, %c0_11], %14 {strides = array<i32>} : memref<1x256xf32, #tpu.memory_space<vmem>>, vector<1x256xf32>,
    } else {
    }
    %c0_4 = arith.constant 0 : index
    %c0_5 = arith.constant 0 : index
    %6 = vector.load %arg5[%c0_4, %c0_5] : memref<1x256xf32, #tpu.memory_space<vmem>>, vector<1x256xf32>
    %cst = arith.constant dense<0.000000e+00> : vector<256xf32>
    %7 = vector.multi_reduction <add>, %0, %cst [0] : vector<256x256xf32> to vector<256xf32>
    %8 = vector.shape_cast %7 : vector<256xf32> to vector<1x256xf32>
    %9 = arith.addf %6, %8 : vector<1x256xf32>
    %c0_6 = arith.constant 0 : index
    %c0_7 = arith.constant 0 : index
    %10 = vector.load %arg5[%c0_6, %c0_7] : memref<1x256xf32, #tpu.memory_space<vmem>>, vector<1x256xf32>
    tpu.vector_store %arg5[%c0_6, %c0_7], %9 {strides = array<i32>} : memref<1x256xf32, #tpu.memory_space<vmem>>, vector<1x256xf32>,
    %c1_i32 = arith.constant 1 : i32
    %11 = arith.cmpi eq, %arg1, %c1_i32 : i32
    %12 = arith.extui %11 : i1 to i32
    %c0_i32_8 = arith.constant 0 : i32
    %13 = arith.cmpi ne, %12, %c0_i32_8 : i32
    scf.if %13 {
      %c0_9 = arith.constant 0 : index
      %c0_10 = arith.constant 0 : index
      %14 = vector.load %arg5[%c0_9, %c0_10] : memref<1x256xf32, #tpu.memory_space<vmem>>, vector<1x256xf32>
      %c0_11 = arith.constant 0 : index
      %c0_12 = arith.constant 0 : index
      %15 = vector.load %arg4[%c0_11, %c0_12] : memref<1x256xf32, #tpu.memory_space<vmem>>, vector<1x256xf32>
      tpu.vector_store %arg4[%c0_11, %c0_12], %14 {strides = array<i32>} : memref<1x256xf32, #tpu.memory_space<vmem>>, vector<1x256xf32>,
    } else {
    }
    return
  }
  func.func @transform_0(%arg0: i32, %arg1: i32) -> (i32, i32) {
    %c0_i32 = arith.constant 0 : i32
    return %arg1, %arg0 : i32, i32
  }
  func.func @transform_1(%arg0: i32, %arg1: i32) -> (i32, i32) {
    %c0_i32 = arith.constant 0 : i32
    return %arg1, %arg0 : i32, i32
  }
  func.func @transform_2(%arg0: i32, %arg1: i32) -> (i32, i32) {
    %c0_i32 = arith.constant 0 : i32
    %c0_i32_0 = arith.constant 0 : i32
    return %c0_i32, %arg0 : i32, i32
  }
}

</mosaic_0001>

<llo_original>
// kernel: tpu_custom_call.1
$region0: #{tpu_custom_call.1}
  #allocation0 [shape = 'u32[]', space=smem, size = 0x4, offset = 0x4, fixed_abs, tag = 'smem constant byte address 0x4 - core index']
  #allocation1 [shape = 'u32[72,128]{1,0:T(1,128)}', space=vmem, size = 0x9000, scoped, tag = 'internal scratch']
  #allocation2 [shape = 'f32[1,256]{1,0:T(1,128)}', space=vmem, size = 0x400, scoped, tag = 'scratch operand']
  %s0 = inlined_call_operand.hbm [shape: f32[512,512], index: 0, kind: input, shape index: {}]
  %s1 = inlined_call_operand.hbm [shape: s8[512,512], index: 1, kind: output, shape index: {0}]
  %s2 = inlined_call_operand.hbm [shape: f32[1,512], index: 2, kind: output, shape index: {1}]
  %3 = xla_tuple %s1, %s2
  %s4 = sld [smem:[#allocation0]]
  $region57: #{tpu_custom_call.1} parent=0
    _
  %s6 = ssub.s32 1, %s4
  %s7 = scalar_select 0, %s6, %s4
  $region1: #{tpu_custom_call.1} parent=0
    #allocation3 [shape = 'u8[524288]{0}', space=vmem, size = 0x80000, scoped, tag = 'input window, operand 0']
    #allocation4 [shape = 's32[2]{0}', space=sflag, size = 0x8, scoped, tag = 'scoped memory for tpu_custom_call.1']
    #allocation5 [shape = 's32[2]{0}', space=sflag, size = 0x8, scoped, tag = 'scoped memory for tpu_custom_call.1']
    #allocation6 [shape = 'u8[131072]{0}', space=vmem, size = 0x20000, scoped, tag = 'output window, operand 0']
    #allocation7 [shape = 'u8[2048]{0}', space=vmem, size = 0x800, scoped, tag = 'output window, operand 1']
    #allocation8 [shape = 's32[2]{0}', space=sflag, size = 0x8, scoped, tag = 'scoped memory for tpu_custom_call.1']
    %8 = vsyncpa [#allocation4], 0
    %s9 = scalar_lea.sflag [#allocation4], 1
    %10 = vsyncpa %s9, 0
    %11 = vsyncpa [#allocation5], 0
    %s12 = scalar_lea.sflag [#allocation5], 1
    %13 = vsyncpa %s12, 0
    %14 = vsyncpa [#allocation8], 0
    %s15 = scalar_lea.sflag [#allocation8], 1
    %16 = vsyncpa %s15, 0
    loop: start=0, step=1, limit=6
    $region2: #{tpu_custom_call.1} parent=1 // loop_pre_header
      _
    $region3: #{tpu_custom_call.1} parent=1 // loop_header
      %s18 = sphi 0, %s22
      %p19 = scmp.ge.s32.totalorder %s18, 6
      %s25 = sphi 0, %s37
      %s26 = sphi 0, %s33
      %s27 = sphi 0, %s25
      %s28 = sphi 0, %s26
      %s29 = sphi 0, %s27
      %s30 = sphi 0, %s28
      %s42 = sphi 0, %s44
      %s45 = sphi 0, %s42
      %s46 = sphi 0, %s45
      %s62 = sphi 0, %s46
      %s70 = sphi 0, %s72
      %s73 = sphi 0, %s70
      %s74 = sphi 0, %s73
      %s90 = sphi 0, %s74
      %s96 = sphi 0, %s98
      %s99 = sphi 0, %s96
      %s100 = sphi 0, %s99
      %s116 = sphi 0, %s100
    $region4: #{tpu_custom_call.1} parent=1 // loop_header_branch
      %21 = sbr.rel (%p19) target = $region8
    $region5: #{tpu_custom_call.1} parent=1 // loop_body
      %s23 = ssub.s32 %s18, 1
      %s24 = ssub.s32 %s18, 2
      %s31 = sadd.s32 1, %s26
      %p32 = scmp.ge.s32.totalorder %s31, 2
      %s33 = scalar_select %p32, 0, %s31
      %s34 = sadd.s32 1, %s25
      %s35 = scalar_select %p32, %s34, %s25
      %p36 = scmp.ge.s32.totalorder %s35, 2
      %s37 = scalar_select %p36, 0, %s35
      %s38 = ssub.s32 %s26, %s33
      %s39 = ssub.s32 %s25, %s37
      %s40 = sor.u32 %s38, %s39
      %p41 = scmp.eq.s32.totalorder %s40, 0
      %s43 = sadd.s32 %s42, 1
      %s44 = scalar_select %p41, %s42, %s43
      %p47 = pneg %p41
      %p48 = scmp.eq.s32.totalorder %s18, 3
      %p49 = por %p47, %p48
      %p50 = scmp.ne.s32.totalorder %s42, %s45
      %p51 = scmp.eq.s32.totalorder %s18, 0
      %p52 = por %p50, %p51
      %p53 = scmp.ne.s32.totalorder %s42, %s45
      %p54 = scmp.eq.s32.totalorder %s23, 3
      %p55 = por %p53, %p54
      %p56 = scmp.ne.s32.totalorder %s45, %s46
      %p57 = scmp.eq.s32.totalorder %s23, 0
      %p58 = por %p56, %p57
      %p59 = scmp.ne.s32.totalorder %s45, %s46
      %p60 = scmp.eq.s32.totalorder %s24, 3
      %p61 = por %p59, %p60
      %p63 = scmp.ne.s32.totalorder %s46, %s62
      %p64 = scmp.eq.s32.totalorder %s24, 0
      %p65 = por %p63, %p64
      %s66 = ssub.s32 %s26, %s33
      %s67 = ssub.s32 %s25, %s37
      %s68 = sor.u32 %s66, %s67
      %p69 = scmp.eq.s32.totalorder %s68, 0
      %s71 = sadd.s32 %s70, 1
      %s72 = scalar_select %p69, %s70, %s71
      %p75 = pneg %p69
      %p76 = scmp.eq.s32.totalorder %s18, 3
      %p77 = por %p75, %p76
      %p78 = scmp.ne.s32.totalorder %s70, %s73
      %p79 = scmp.eq.s32.totalorder %s18, 0
      %p80 = por %p78, %p79
      %p81 = scmp.ne.s32.totalorder %s70, %s73
      %p82 = scmp.eq.s32.totalorder %s23, 3
      %p83 = por %p81, %p82
      %p84 = scmp.ne.s32.totalorder %s73, %s74
      %p85 = scmp.eq.s32.totalorder %s23, 0
      %p86 = por %p84, %p85
      %p87 = scmp.ne.s32.totalorder %s73, %s74
      %p88 = scmp.eq.s32.totalorder %s24, 3
      %p89 = por %p87, %p88
      %p91 = scmp.ne.s32.totalorder %s74, %s90
      %p92 = scmp.eq.s32.totalorder %s24, 0
      %p93 = por %p91, %p92
      %s94 = ssub.s32 %s25, %s37
      %p95 = scmp.eq.s32.totalorder %s94, 0
      %s97 = sadd.s32 %s96, 1
      %s98 = scalar_select %p95, %s96, %s97
      %p101 = pneg %p95
      %p102 = scmp.eq.s32.totalorder %s18, 3
      %p103 = por %p101, %p102
      %p104 = scmp.ne.s32.totalorder %s96, %s99
      %p105 = scmp.eq.s32.totalorder %s18, 0
      %p106 = por %p104, %p105
      %p107 = scmp.ne.s32.totalorder %s96, %s99
      %p108 = scmp.eq.s32.totalorder %s23, 3
      %p109 = por %p107, %p108
      %p110 = scmp.ne.s32.totalorder %s99, %s100
      %p111 = scmp.eq.s32.totalorder %s23, 0
      %p112 = por %p110, %p111
      %p113 = scmp.ne.s32.totalorder %s99, %s100
      %p114 = scmp.eq.s32.totalorder %s24, 3
      %p115 = por %p113, %p114
      %p117 = scmp.ne.s32.totalorder %s100, %s116
      %p118 = scmp.eq.s32.totalorder %s24, 0
      %p119 = por %p117, %p118
      %p120 = scmp.le.s32.totalorder 1, %s18
      %p121 = scmp.lt.s32.totalorder %s18, 5
      %p122 = pnand %p120, %p121
      %p123 = pneg %p122
      // Predicated region
      $region9: #{tpu_custom_call.1} parent=5 // pred_check
        _
      $region10: #{tpu_custom_call.1} parent=5 // pred_check_branch
        %125 = sbr.rel (%p122) target = $region12
      $region11: #{tpu_custom_call.1} parent=5 // pred_region
        %s126 = ssub.s32 %s18, 1
      $region12: #{tpu_custom_call.1} parent=5 // pred_fallthru
        _
      %p127 = scmp.lt.s32.totalorder %s18, 4
      // Predicated region
      $region13: #{tpu_custom_call.1} parent=5 // pred_check
        %p128 = pneg %p127
      $region14: #{tpu_custom_call.1} parent=5 // pred_check_branch
        %130 = sbr.rel (%p128) target = $region16
      $region15: #{tpu_custom_call.1} parent=5 // pred_region
        // Predicated region
        $region17: #{tpu_custom_call.1} parent=15 // pred_check
          %p131 = pneg %p52
        $region18: #{tpu_custom_call.1} parent=15 // pred_check_branch
          %133 = sbr.rel (%p131) target = $region20
        $region19: #{tpu_custom_call.1} parent=15 // pred_region
          %s134 = sand.u32 %s42, 1
          %s135 = scalar_lea.sflag [#allocation4], %s134
          %s136 = sand.u32 %s42, 1
          %s137 = smul.addr %s136, 512
          %s138 = scalar_lea.vmem [#allocation3], %s137
          %s139 = smul.u32 32, %s26
          %s140 = smul.u32 2, %s25
          %142 = vsyncadd %s135, 0
          %s143 = smul.addr %s139, 4
          %s144 = sadd.s32 %s140, %s143
          %s145 = smul.addr %s144, 8
          %s146 = scalar_lea.hbm %s0, %s145
          %s147 = sshll.u32 %s146, 4
          %s148 = int_to_ptr.hbm [resolvable:$true] %s147
          %s149 = sshll.u32 %s138, 4
          %s150 = int_to_ptr.vmem [resolvable:$true] %s149
          %155 = dma.hbm_to_vmem [thread:$0]  %s148, 8192, %s150, %s135, 512, 256, 16
        $region20: #{tpu_custom_call.1} parent=15 // pred_fallthru
          _
      $region16: #{tpu_custom_call.1} parent=5 // pred_fallthru
        _
      %p156 = scmp.le.s32.totalorder 1, %s18
      %p157 = scmp.lt.s32.totalorder %s18, 5
      %p158 = pnand %p156, %p157
      %p159 = pneg %p158
      // Predicated region
      $region21: #{tpu_custom_call.1} parent=5 // pred_check
        _
      $region22: #{tpu_custom_call.1} parent=5 // pred_check_branch
        %161 = sbr.rel (%p158) target = $region24
      $region23: #{tpu_custom_call.1} parent=5 // pred_region
        %s162 = ssub.s32 %s18, 1
        %s163 = sand.u32 %s45, 1
        %s164 = scalar_lea.sflag [#allocation4], %s163
        %s165 = sand.u32 %s45, 1
        %s166 = smul.addr %s165, 512
        %s167 = scalar_lea.vmem [#allocation3], %s166
        // Predicated region
        $region25: #{tpu_custom_call.1} parent=23 // pred_check
          %p168 = pneg %p58
        $region26: #{tpu_custom_call.1} parent=23 // pred_check_branch
          %170 = sbr.rel (%p168) target = $region28
        $region27: #{tpu_custom_call.1} parent=23 // pred_region
          %172 = dma.done %s164, 8192
        $region28: #{tpu_custom_call.1} parent=23 // pred_fallthru
          _
        %s173 = sand.u32 %s45, 1
        %s174 = scalar_lea.sflag [#allocation4], %s173
        %s175 = sand.u32 %s45, 1
        %s176 = smul.addr %s175, 512
        %s177 = scalar_lea.vmem [#allocation3], %s176
        %p178 = pneg %p58
        %p179 = pneg %p55
        %p180 = pneg %p86
        %p181 = pneg %p83
        %s182 = sand.u32 %s73, 1
        %s183 = scalar_lea.sflag [#allocation5], %s182
        %s184 = sand.u32 %s73, 1
        %s185 = smul.addr %s184, 128
        %s186 = scalar_lea.vmem [#allocation6], %s185
        %p187 = pneg %p112
        %p188 = pneg %p109
        %s189 = sand.u32 %s99, 1
        %s190 = scalar_lea.sflag [#allocation8], %s189
        %s191 = sand.u32 %s99, 1
        %s192 = smul.addr %s191, 2
        %s193 = scalar_lea.vmem [#allocation7], %s192
        %s194 = smul.u32 32, %s28
        %s195 = smul.u32 2, %s27
        %s196 = smul.u32 8, %s28
        %s197 = smul.u32 2, %s27
        %s198 = smul.u32 2, %s27
        %v199 = vld [vmem:[%s167] sm:$0xff]
        %v200 = vld [vmem:[%s167 + $0x8] sm:$0xff]
        %v201 = vld [vmem:[%s167 + $0x10] sm:$0xff]
        %v202 = vld [vmem:[%s167 + $0x18] sm:$0xff]
        %v203 = vld [vmem:[%s167 + $0x20] sm:$0xff]
        %v204 = vld [vmem:[%s167 + $0x28] sm:$0xff]
        %v205 = vld [vmem:[%s167 + $0x30] sm:$0xff]
        %v206 = vld [vmem:[%s167 + $0x38] sm:$0xff]
        %v207 = vld [vmem:[%s167 + $0x40] sm:$0xff]
        %v208 = vld [vmem:[%s167 + $0x48] sm:$0xff]
        %v209 = vld [vmem:[%s167 + $0x50] sm:$0xff]
        %v210 = vld [vmem:[%s167 + $0x58] sm:$0xff]
        %v211 = vld [vmem:[%s167 + $0x60] sm:$0xff]
        %v212 = vld [vmem:[%s167 + $0x68] sm:$0xff]
        %v213 = vld [vmem:[%s167 + $0x70] sm:$0xff]
        %v214 = vld [vmem:[%s167 + $0x78] sm:$0xff]
        %v215 = vld [vmem:[%s167 + $0x80] sm:$0xff]
        %v216 = vld [vmem:[%s167 + $0x88] sm:$0xff]
        %v217 = vld [vmem:[%s167 + $0x90] sm:$0xff]
        %v218 = vld [vmem:[%s167 + $0x98] sm:$0xff]
        %v219 = vld [vmem:[%s167 + $0xa0] sm:$0xff]
        %v220 = vld [vmem:[%s167 + $0xa8] sm:$0xff]
        %v221 = vld [vmem:[%s167 + $0xb0] sm:$0xff]
        %v222 = vld [vmem:[%s167 + $0xb8] sm:$0xff]
        %v223 = vld [vmem:[%s167 + $0xc0] sm:$0xff]
        %v224 = vld [vmem:[%s167 + $0xc8] sm:$0xff]
        %v225 = vld [vmem:[%s167 + $0xd0] sm:$0xff]
        %v226 = vld [vmem:[%s167 + $0xd8] sm:$0xff]
        %v227 = vld [vmem:[%s167 + $0xe0] sm:$0xff]
        %v228 = vld [vmem:[%s167 + $0xe8] sm:$0xff]
        %v229 = vld [vmem:[%s167 + $0xf0] sm:$0xff]
        %v230 = vld [vmem:[%s167 + $0xf8] sm:$0xff]
        %v231 = vld [vmem:[%s167 + $0x100] sm:$0xff]
        %v232 = vld [vmem:[%s167 + $0x108] sm:$0xff]
        %v233 = vld [vmem:[%s167 + $0x110] sm:$0xff]
        %v234 = vld [vmem:[%s167 + $0x118] sm:$0xff]
        %v235 = vld [vmem:[%s167 + $0x120] sm:$0xff]
        %v236 = vld [vmem:[%s167 + $0x128] sm:$0xff]
        %v237 = vld [vmem:[%s167 + $0x130] sm:$0xff]
        %v238 = vld [vmem:[%s167 + $0x138] sm:$0xff]
        %v239 = vld [vmem:[%s167 + $0x140] sm:$0xff]
        %v240 = vld [vmem:[%s167 + $0x148] sm:$0xff]
        %v241 = vld [vmem:[%s167 + $0x150] sm:$0xff]
        %v242 = vld [vmem:[%s167 + $0x158] sm:$0xff]
        %v243 = vld [vmem:[%s167 + $0x160] sm:$0xff]
        %v244 = vld [vmem:[%s167 + $0x168] sm:$0xff]
        %v245 = vld [vmem:[%s167 + $0x170] sm:$0xff]
        %v246 = vld [vmem:[%s167 + $0x178] sm:$0xff]
        %v247 = vld [vmem:[%s167 + $0x180] sm:$0xff]
        %v248 = vld [vmem:[%s167 + $0x188] sm:$0xff]
        %v249 = vld [vmem:[%s167 + $0x190] sm:$0xff]
        %v250 = vld [vmem:[%s167 + $0x198] sm:$0xff]
        %v251 = vld [vmem:[%s167 + $0x1a0] sm:$0xff]
        %v252 = vld [vmem:[%s167 + $0x1a8] sm:$0xff]
        %v253 = vld [vmem:[%s167 + $0x1b0] sm:$0xff]
        %v254 = vld [vmem:[%s167 + $0x1b8] sm:$0xff]
        %v255 = vld [vmem:[%s167 + $0x1c0] sm:$0xff]
        %v256 = vld [vmem:[%s167 + $0x1c8] sm:$0xff]
        %v257 = vld [vmem:[%s167 + $0x1d0] sm:$0xff]
        %v258 = vld [vmem:[%s167 + $0x1d8] sm:$0xff]
        %v259 = vld [vmem:[%s167 + $0x1e0] sm:$0xff]
        %v260 = vld [vmem:[%s167 + $0x1e8] sm:$0xff]
        %v261 = vld [vmem:[%s167 + $0x1f0] sm:$0xff]
        %v262 = vld [vmem:[%s167 + $0x1f8] sm:$0xff]
        %v263 = vmax.f32 %v199, -128.0
        %v264 = vmax.f32 %v200, -128.0
        %v265 = vmax.f32 %v201, -128.0
        %v266 = vmax.f32 %v202, -128.0
        %v267 = vmax.f32 %v203, -128.0
        %v268 = vmax.f32 %v204, -128.0
        %v269 = vmax.f32 %v205, -128.0
        %v270 = vmax.f32 %v206, -128.0
        %v271 = vmax.f32 %v207, -128.0
        %v272 = vmax.f32 %v208, -128.0
        %v273 = vmax.f32 %v209, -128.0
        %v274 = vmax.f32 %v210, -128.0
        %v275 = vmax.f32 %v211, -128.0
        %v276 = vmax.f32 %v212, -128.0
        %v277 = vmax.f32 %v213, -128.0
        %v278 = vmax.f32 %v214, -128.0
        %v279 = vmax.f32 %v215, -128.0
        %v280 = vmax.f32 %v216, -128.0
        %v281 = vmax.f32 %v217, -128.0
        %v282 = vmax.f32 %v218, -128.0
        %v283 = vmax.f32 %v219, -128.0
        %v284 = vmax.f32 %v220, -128.0
        %v285 = vmax.f32 %v221, -128.0
        %v286 = vmax.f32 %v222, -128.0
        %v287 = vmax.f32 %v223, -128.0
        %v288 = vmax.f32 %v224, -128.0
        %v289 = vmax.f32 %v225, -128.0
        %v290 = vmax.f32 %v226, -128.0
        %v291 = vmax.f32 %v227, -128.0
        %v292 = vmax.f32 %v228, -128.0
        %v293 = vmax.f32 %v229, -128.0
        %v294 = vmax.f32 %v230, -128.0
        %v295 = vmax.f32 %v231, -128.0
        %v296 = vmax.f32 %v232, -128.0
        %v297 = vmax.f32 %v233, -128.0
        %v298 = vmax.f32 %v234, -128.0
        %v299 = vmax.f32 %v235, -128.0
        %v300 = vmax.f32 %v236, -128.0
        %v301 = vmax.f32 %v237, -128.0
        %v302 = vmax.f32 %v238, -128.0
        %v303 = vmax.f32 %v239, -128.0
        %v304 = vmax.f32 %v240, -128.0
        %v305 = vmax.f32 %v241, -128.0
        %v306 = vmax.f32 %v242, -128.0
        %v307 = vmax.f32 %v243, -128.0
        %v308 = vmax.f32 %v244, -128.0
        %v309 = vmax.f32 %v245, -128.0
        %v310 = vmax.f32 %v246, -128.0
        %v311 = vmax.f32 %v247, -128.0
        %v312 = vmax.f32 %v248, -128.0
        %v313 = vmax.f32 %v249, -128.0
        %v314 = vmax.f32 %v250, -128.0
        %v315 = vmax.f32 %v251, -128.0
        %v316 = vmax.f32 %v252, -128.0
        %v317 = vmax.f32 %v253, -128.0
        %v318 = vmax.f32 %v254, -128.0
        %v319 = vmax.f32 %v255, -128.0
        %v320 = vmax.f32 %v256, -128.0
        %v321 = vmax.f32 %v257, -128.0
        %v322 = vmax.f32 %v258, -128.0
        %v323 = vmax.f32 %v259, -128.0
        %v324 = vmax.f32 %v260, -128.0
        %v325 = vmax.f32 %v261, -128.0
        %v326 = vmax.f32 %v262, -128.0
        %v327 = vmin.f32 %v263, 127.0
        %v328 = vmin.f32 %v264, 127.0
        %v329 = vmin.f32 %v265, 127.0
        %v330 = vmin.f32 %v266, 127.0
        %v331 = vmin.f32 %v267, 127.0
        %v332 = vmin.f32 %v268, 127.0
        %v333 = vmin.f32 %v269, 127.0
        %v334 = vmin.f32 %v270, 127.0
        %v335 = vmin.f32 %v271, 127.0
        %v336 = vmin.f32 %v272, 127.0
        %v337 = vmin.f32 %v273, 127.0
        %v338 = vmin.f32 %v274, 127.0
        %v339 = vmin.f32 %v275, 127.0
        %v340 = vmin.f32 %v276, 127.0
        %v341 = vmin.f32 %v277, 127.0
        %v342 = vmin.f32 %v278, 127.0
        %v343 = vmin.f32 %v279, 127.0
        %v344 = vmin.f32 %v280, 127.0
        %v345 = vmin.f32 %v281, 127.0
        %v346 = vmin.f32 %v282, 127.0
        %v347 = vmin.f32 %v283, 127.0
        %v348 = vmin.f32 %v284, 127.0
        %v349 = vmin.f32 %v285, 127.0
        %v350 = vmin.f32 %v286, 127.0
        %v351 = vmin.f32 %v287, 127.0
        %v352 = vmin.f32 %v288, 127.0
        %v353 = vmin.f32 %v289, 127.0
        %v354 = vmin.f32 %v290, 127.0
        %v355 = vmin.f32 %v291, 127.0
        %v356 = vmin.f32 %v292, 127.0
        %v357 = vmin.f32 %v293, 127.0
        %v358 = vmin.f32 %v294, 127.0
        %v359 = vmin.f32 %v295, 127.0
        %v360 = vmin.f32 %v296, 127.0
        %v361 = vmin.f32 %v297, 127.0
        %v362 = vmin.f32 %v298, 127.0
        %v363 = vmin.f32 %v299, 127.0
        %v364 = vmin.f32 %v300, 127.0
        %v365 = vmin.f32 %v301, 127.0
        %v366 = vmin.f32 %v302, 127.0
        %v367 = vmin.f32 %v303, 127.0
        %v368 = vmin.f32 %v304, 127.0
        %v369 = vmin.f32 %v305, 127.0
        %v370 = vmin.f32 %v306, 127.0
        %v371 = vmin.f32 %v307, 127.0
        %v372 = vmin.f32 %v308, 127.0
        %v373 = vmin.f32 %v309, 127.0
        %v374 = vmin.f32 %v310, 127.0
        %v375 = vmin.f32 %v311, 127.0
        %v376 = vmin.f32 %v312, 127.0
        %v377 = vmin.f32 %v313, 127.0
        %v378 = vmin.f32 %v314, 127.0
        %v379 = vmin.f32 %v315, 127.0
        %v380 = vmin.f32 %v316, 127.0
        %v381 = vmin.f32 %v317, 127.0
        %v382 = vmin.f32 %v318, 127.0
        %v383 = vmin.f32 %v319, 127.0
        %v384 = vmin.f32 %v320, 127.0
        %v385 = vmin.f32 %v321, 127.0
        %v386 = vmin.f32 %v322, 127.0
        %v387 = vmin.f32 %v323, 127.0
        %v388 = vmin.f32 %v324, 127.0
        %v389 = vmin.f32 %v325, 127.0
        %v390 = vmin.f32 %v326, 127.0
        %v391 = vcvt.f32.s32.to.zero.pseudo %v327
        %v392 = vcvt.f32.s32.to.zero.pseudo %v328
        %v393 = vcvt.f32.s32.to.zero.pseudo %v329
        %v394 = vcvt.f32.s32.to.zero.pseudo %v330
        %v395 = vcvt.f32.s32.to.zero.pseudo %v331
        %v396 = vcvt.f32.s32.to.zero.pseudo %v332
        %v397 = vcvt.f32.s32.to.zero.pseudo %v333
        %v398 = vcvt.f32.s32.to.zero.pseudo %v334
        %v399 = vcvt.f32.s32.to.zero.pseudo %v335
        %v400 = vcvt.f32.s32.to.zero.pseudo %v336
        %v401 = vcvt.f32.s32.to.zero.pseudo %v337
        %v402 = vcvt.f32.s32.to.zero.pseudo %v338
        %v403 = vcvt.f32.s32.to.zero.pseudo %v339
        %v404 = vcvt.f32.s32.to.zero.pseudo %v340
        %v405 = vcvt.f32.s32.to.zero.pseudo %v341
        %v406 = vcvt.f32.s32.to.zero.pseudo %v342
        %v407 = vcvt.f32.s32.to.zero.pseudo %v343
        %v408 = vcvt.f32.s32.to.zero.pseudo %v344
        %v409 = vcvt.f32.s32.to.zero.pseudo %v345
        %v410 = vcvt.f32.s32.to.zero.pseudo %v346
        %v411 = vcvt.f32.s32.to.zero.pseudo %v347
        %v412 = vcvt.f32.s32.to.zero.pseudo %v348
        %v413 = vcvt.f32.s32.to.zero.pseudo %v349
        %v414 = vcvt.f32.s32.to.zero.pseudo %v350
        %v415 = vcvt.f32.s32.to.zero.pseudo %v351
        %v416 = vcvt.f32.s32.to.zero.pseudo %v352
        %v417 = vcvt.f32.s32.to.zero.pseudo %v353
        %v418 = vcvt.f32.s32.to.zero.pseudo %v354
        %v419 = vcvt.f32.s32.to.zero.pseudo %v355
        %v420 = vcvt.f32.s32.to.zero.pseudo %v356
        %v421 = vcvt.f32.s32.to.zero.pseudo %v357
        %v422 = vcvt.f32.s32.to.zero.pseudo %v358
        %v423 = vcvt.f32.s32.to.zero.pseudo %v359
        %v424 = vcvt.f32.s32.to.zero.pseudo %v360
        %v425 = vcvt.f32.s32.to.zero.pseudo %v361
        %v426 = vcvt.f32.s32.to.zero.pseudo %v362
        %v427 = vcvt.f32.s32.to.zero.pseudo %v363
        %v428 = vcvt.f32.s32.to.zero.pseudo %v364
        %v429 = vcvt.f32.s32.to.zero.pseudo %v365
        %v430 = vcvt.f32.s32.to.zero.pseudo %v366
        %v431 = vcvt.f32.s32.to.zero.pseudo %v367
        %v432 = vcvt.f32.s32.to.zero.pseudo %v368
        %v433 = vcvt.f32.s32.to.zero.pseudo %v369
        %v434 = vcvt.f32.s32.to.zero.pseudo %v370
        %v435 = vcvt.f32.s32.to.zero.pseudo %v371
        %v436 = vcvt.f32.s32.to.zero.pseudo %v372
        %v437 = vcvt.f32.s32.to.zero.pseudo %v373
        %v438 = vcvt.f32.s32.to.zero.pseudo %v374
        %v439 = vcvt.f32.s32.to.zero.pseudo %v375
        %v440 = vcvt.f32.s32.to.zero.pseudo %v376
        %v441 = vcvt.f32.s32.to.zero.pseudo %v377
        %v442 = vcvt.f32.s32.to.zero.pseudo %v378
        %v443 = vcvt.f32.s32.to.zero.pseudo %v379
        %v444 = vcvt.f32.s32.to.zero.pseudo %v380
        %v445 = vcvt.f32.s32.to.zero.pseudo %v381
        %v446 = vcvt.f32.s32.to.zero.pseudo %v382
        %v447 = vcvt.f32.s32.to.zero.pseudo %v383
        %v448 = vcvt.f32.s32.to.zero.pseudo %v384
        %v449 = vcvt.f32.s32.to.zero.pseudo %v385
        %v450 = vcvt.f32.s32.to.zero.pseudo %v386
        %v451 = vcvt.f32.s32.to.zero.pseudo %v387
        %v452 = vcvt.f32.s32.to.zero.pseudo %v388
        %v453 = vcvt.f32.s32.to.zero.pseudo %v389
        %v454 = vcvt.f32.s32.to.zero.pseudo %v390
        %v455 = vpack.c.b16 %v393, %v391
        %v456 = vpack.c.b16 %v397, %v395
        %v457 = vpack.c.b8 %v456, %v455
        %v458 = vpack.c.b16 %v394, %v392
        %v459 = vpack.c.b16 %v398, %v396
        %v460 = vpack.c.b8 %v459, %v458
        %v461 = vpack.c.b16 %v401, %v399
        %v462 = vpack.c.b16 %v405, %v403
        %v463 = vpack.c.b8 %v462, %v461
        %v464 = vpack.c.b16 %v402, %v400
        %v465 = vpack.c.b16 %v406, %v404
        %v466 = vpack.c.b8 %v465, %v464
        %v467 = vpack.c.b16 %v409, %v407
        %v468 = vpack.c.b16 %v413, %v411
        %v469 = vpack.c.b8 %v468, %v467
        %v470 = vpack.c.b16 %v410, %v408
        %v471 = vpack.c.b16 %v414, %v412
        %v472 = vpack.c.b8 %v471, %v470
        %v473 = vpack.c.b16 %v417, %v415
        %v474 = vpack.c.b16 %v421, %v419
        %v475 = vpack.c.b8 %v474, %v473
        %v476 = vpack.c.b16 %v418, %v416
        %v477 = vpack.c.b16 %v422, %v420
        %v478 = vpack.c.b8 %v477, %v476
        %v479 = vpack.c.b16 %v425, %v423
        %v480 = vpack.c.b16 %v429, %v427
        %v481 = vpack.c.b8 %v480, %v479
        %v482 = vpack.c.b16 %v426, %v424
        %v483 = vpack.c.b16 %v430, %v428
        %v484 = vpack.c.b8 %v483, %v482
        %v485 = vpack.c.b16 %v433, %v431
        %v486 = vpack.c.b16 %v437, %v435
        %v487 = vpack.c.b8 %v486, %v485
        %v488 = vpack.c.b16 %v434, %v432
        %v489 = vpack.c.b16 %v438, %v436
        %v490 = vpack.c.b8 %v489, %v488
        %v491 = vpack.c.b16 %v441, %v439
        %v492 = vpack.c.b16 %v445, %v443
        %v493 = vpack.c.b8 %v492, %v491
        %v494 = vpack.c.b16 %v442, %v440
        %v495 = vpack.c.b16 %v446, %v444
        %v496 = vpack.c.b8 %v495, %v494
        %v497 = vpack.c.b16 %v449, %v447
        %v498 = vpack.c.b16 %v453, %v451
        %v499 = vpack.c.b8 %v498, %v497
        %v500 = vpack.c.b16 %v450, %v448
        %v501 = vpack.c.b16 %v454, %v452
        %v502 = vpack.c.b8 %v501, %v500
        %503 = vst [vmem:[%s186] sm:$0xff] %v457
        %504 = vst [vmem:[%s186 + $0x8] sm:$0xff] %v460
        %505 = vst [vmem:[%s186 + $0x10] sm:$0xff] %v463
        %506 = vst [vmem:[%s186 + $0x18] sm:$0xff] %v466
        %507 = vst [vmem:[%s186 + $0x20] sm:$0xff] %v469
        %508 = vst [vmem:[%s186 + $0x28] sm:$0xff] %v472
        %509 = vst [vmem:[%s186 + $0x30] sm:$0xff] %v475
        %510 = vst [vmem:[%s186 + $0x38] sm:$0xff] %v478
        %511 = vst [vmem:[%s186 + $0x40] sm:$0xff] %v481
        %512 = vst [vmem:[%s186 + $0x48] sm:$0xff] %v484
        %513 = vst [vmem:[%s186 + $0x50] sm:$0xff] %v487
        %514 = vst [vmem:[%s186 + $0x58] sm:$0xff] %v490
        %515 = vst [vmem:[%s186 + $0x60] sm:$0xff] %v493
        %516 = vst [vmem:[%s186 + $0x68] sm:$0xff] %v496
        %517 = vst [vmem:[%s186 + $0x70] sm:$0xff] %v499
        %518 = vst [vmem:[%s186 + $0x78] sm:$0xff] %v502
        %p519 = scmp.eq.s32.totalorder %s28, 0
        // Predicated region
        $region29: #{tpu_custom_call.1} parent=23 // pred_check
          %p520 = pneg %p519
        $region30: #{tpu_custom_call.1} parent=23 // pred_check_branch
          %522 = sbr.rel (%p520) target = $region32
        $region31: #{tpu_custom_call.1} parent=23 // pred_region
          %v523 = vlaneseq
          %vm524 = vcmp.ge.s32.totalorder %v523, 0
          %vm525 = vcmp.lt.s32.totalorder %v523, 256
          %vm526 = vmand %vm524, %vm525
          %527 = vst.msk [vmem:[#allocation2] sm:$0x3] %vm526, 0.0
        $region32: #{tpu_custom_call.1} parent=23 // pred_fallthru
          _
        %v528 = vld [vmem:[#allocation2] sm:$0x3]
        %v529 = vadd.f32 %v199, %v201
        %v530 = vadd.f32 %v529, %v203
        %v531 = vadd.f32 %v530, %v205
        %v532 = vadd.f32 %v531, %v207
        %v533 = vadd.f32 %v532, %v209
        %v534 = vadd.f32 %v533, %v211
        %v535 = vadd.f32 %v534, %v213
        %v536 = vadd.f32 %v535, %v215
        %v537 = vadd.f32 %v536, %v217
        %v538 = vadd.f32 %v537, %v219
        %v539 = vadd.f32 %v538, %v221
        %v540 = vadd.f32 %v539, %v223
        %v541 = vadd.f32 %v540, %v225
        %v542 = vadd.f32 %v541, %v227
        %v543 = vadd.f32 %v542, %v229
        %v544 = vadd.f32 %v543, %v231
        %v545 = vadd.f32 %v544, %v233
        %v546 = vadd.f32 %v545, %v235
        %v547 = vadd.f32 %v546, %v237
        %v548 = vadd.f32 %v547, %v239
        %v549 = vadd.f32 %v548, %v241
        %v550 = vadd.f32 %v549, %v243
        %v551 = vadd.f32 %v550, %v245
        %v552 = vadd.f32 %v551, %v247
        %v553 = vadd.f32 %v552, %v249
        %v554 = vadd.f32 %v553, %v251
        %v555 = vadd.f32 %v554, %v253
        %v556 = vadd.f32 %v555, %v255
        %v557 = vadd.f32 %v556, %v257
        %v558 = vadd.f32 %v557, %v259
        %v559 = vadd.f32 %v558, %v261
        %v560 = vrot.slane %v559, 4
        %v561 = vadd.f32 %v559, %v560
        %v562 = vrot.slane %v561, 2
        %v563 = vadd.f32 %v561, %v562
        %v564 = vrot.slane %v563, 1
        %v565 = vadd.f32 %v563, %v564
        %v566 = vadd.f32 %v200, %v202
        %v567 = vadd.f32 %v566, %v204
        %v568 = vadd.f32 %v567, %v206
        %v569 = vadd.f32 %v568, %v208
        %v570 = vadd.f32 %v569, %v210
        %v571 = vadd.f32 %v570, %v212
        %v572 = vadd.f32 %v571, %v214
        %v573 = vadd.f32 %v572, %v216
        %v574 = vadd.f32 %v573, %v218
        %v575 = vadd.f32 %v574, %v220
        %v576 = vadd.f32 %v575, %v222
        %v577 = vadd.f32 %v576, %v224
        %v578 = vadd.f32 %v577, %v226
        %v579 = vadd.f32 %v578, %v228
        %v580 = vadd.f32 %v579, %v230
        %v581 = vadd.f32 %v580, %v232
        %v582 = vadd.f32 %v581, %v234
        %v583 = vadd.f32 %v582, %v236
        %v584 = vadd.f32 %v583, %v238
        %v585 = vadd.f32 %v584, %v240
        %v586 = vadd.f32 %v585, %v242
        %v587 = vadd.f32 %v586, %v244
        %v588 = vadd.f32 %v587, %v246
        %v589 = vadd.f32 %v588, %v248
        %v590 = vadd.f32 %v589, %v250
        %v591 = vadd.f32 %v590, %v252
        %v592 = vadd.f32 %v591, %v254
        %v593 = vadd.f32 %v592, %v256
        %v594 = vadd.f32 %v593, %v258
        %v595 = vadd.f32 %v594, %v260
        %v596 = vadd.f32 %v595, %v262
        %v597 = vrot.slane %v596, 4
        %v598 = vadd.f32 %v596, %v597
        %v599 = vrot.slane %v598, 2
        %v600 = vadd.f32 %v598, %v599
        %v601 = vrot.slane %v600, 1
        %v602 = vadd.f32 %v600, %v601
        %v605 = vrot.slane %v602, 7
        %vm606 = vcmask 1040384
        %v607 = vsel %vm606, %v565, %v605
        %v609 = vadd.f32 %v528, %v607
        %v610 = vlaneseq
        %vm611 = vcmp.ge.s32.totalorder %v610, 0
        %vm612 = vcmp.lt.s32.totalorder %v610, 256
        %vm613 = vmand %vm611, %vm612
        %614 = vst.msk [vmem:[#allocation2] sm:$0x3] %vm613, %v609
        %p615 = scmp.eq.s32.totalorder %s28, 1
        // Predicated region
        $region33: #{tpu_custom_call.1} parent=23 // pred_check
          %p616 = pneg %p615
        $region34: #{tpu_custom_call.1} parent=23 // pred_check_branch
          %618 = sbr.rel (%p616) target = $region36
        $region35: #{tpu_custom_call.1} parent=23 // pred_region
          %v619 = vld [vmem:[#allocation2] sm:$0x3]
          %620 = vst.msk [vmem:[%s193] sm:$0x3] %vm613, %v619
        $region36: #{tpu_custom_call.1} parent=23 // pred_fallthru
          _
        %s621 = sand.u32 %s73, 1
        %s622 = scalar_lea.sflag [#allocation5], %s621
        %s623 = sand.u32 %s73, 1
        %s624 = smul.addr %s623, 128
        %s625 = scalar_lea.vmem [#allocation6], %s624
        %s626 = sand.u32 %s99, 1
        %s627 = scalar_lea.sflag [#allocation8], %s626
        %s628 = sand.u32 %s99, 1
        %s629 = smul.addr %s628, 2
        %s630 = scalar_lea.vmem [#allocation7], %s629
        // Predicated region
        $region37: #{tpu_custom_call.1} parent=23 // pred_check
          %p631 = pneg %p83
        $region38: #{tpu_custom_call.1} parent=23 // pred_check_branch
          %633 = sbr.rel (%p631) target = $region40
        $region39: #{tpu_custom_call.1} parent=23 // pred_region
          %s634 = smul.u32 8, %s28
          %s635 = smul.u32 2, %s27
          %637 = vsyncadd %s622, 0
          %s638 = smul.addr %s634, 4
          %s639 = sadd.s32 %s635, %s638
          %s640 = smul.addr %s639, 8
          %s641 = scalar_lea.hbm %s1, %s640
          %s642 = sshll.u32 %s625, 4
          %s643 = int_to_ptr.vmem [resolvable:$true] %s642
          %s644 = sshll.u32 %s641, 4
          %s645 = int_to_ptr.hbm [resolvable:$true] %s644
          %650 = dma.vmem_to_hbm [thread:$0]  %s643, 2048, %s645, %s622, 256, 512, 16
        $region40: #{tpu_custom_call.1} parent=23 // pred_fallthru
          _
        // Predicated region
        $region41: #{tpu_custom_call.1} parent=23 // pred_check
          %p651 = pneg %p109
        $region42: #{tpu_custom_call.1} parent=23 // pred_check_branch
          %653 = sbr.rel (%p651) target = $region44
        $region43: #{tpu_custom_call.1} parent=23 // pred_region
          %s654 = smul.u32 2, %s27
          %656 = vsyncadd %s627, 0
          %s657 = scalar_lea.hbm %s2, %s654
          %s659 = sshll.u32 %s630, 4
          %s660 = int_to_ptr.vmem [resolvable:$true] %s659
          %s661 = sshll.u32 %s657, 4
          %s662 = int_to_ptr.hbm [resolvable:$true] %s661
          %664 = dma.vmem_to_hbm [thread:$0]  %s660, 32, %s662, %s627
        $region44: #{tpu_custom_call.1} parent=23 // pred_fallthru
          _
      $region24: #{tpu_custom_call.1} parent=5 // pred_fallthru
        _
      %p665 = scmp.le.s32.totalorder 2, %s18
      // Predicated region
      $region45: #{tpu_custom_call.1} parent=5 // pred_check
        %p666 = pneg %p665
      $region46: #{tpu_custom_call.1} parent=5 // pred_check_branch
        %668 = sbr.rel (%p666) target = $region48
      $region47: #{tpu_custom_call.1} parent=5 // pred_region
        %s669 = ssub.s32 %s18, 2
        // Predicated region
        $region49: #{tpu_custom_call.1} parent=47 // pred_check
          %p670 = pneg %p89
        $region50: #{tpu_custom_call.1} parent=47 // pred_check_branch
          %672 = sbr.rel (%p670) target = $region52
        $region51: #{tpu_custom_call.1} parent=47 // pred_region
          %s673 = sand.u32 %s74, 1
          %s674 = scalar_lea.sflag [#allocation5], %s673
          %s675 = sand.u32 %s74, 1
          %s676 = smul.addr %s675, 128
          %s677 = scalar_lea.vmem [#allocation6], %s676
          %679 = dma.done %s674, 2048
        $region52: #{tpu_custom_call.1} parent=47 // pred_fallthru
          _
        // Predicated region
        $region53: #{tpu_custom_call.1} parent=47 // pred_check
          %p680 = pneg %p115
        $region54: #{tpu_custom_call.1} parent=47 // pred_check_branch
          %682 = sbr.rel (%p680) target = $region56
        $region55: #{tpu_custom_call.1} parent=47 // pred_region
          %s683 = sand.u32 %s100, 1
          %s684 = scalar_lea.sflag [#allocation8], %s683
          %s685 = sand.u32 %s100, 1
          %s686 = smul.addr %s685, 2
          %s687 = scalar_lea.vmem [#allocation7], %s686
          %689 = dma.done %s684, 32
        $region56: #{tpu_custom_call.1} parent=47 // pred_fallthru
          _
      $region48: #{tpu_custom_call.1} parent=5 // pred_fallthru
        _
    $region6: #{tpu_custom_call.1} parent=1 // loop_footer
      %s22 = sadd.s32 1, %s18
    $region7: #{tpu_custom_call.1} parent=1 // loop_footer_branch
      %17 = sbr.rel target = $region3
    $region8: #{tpu_custom_call.1} parent=1 // loop_exit
      _
    %690 = vsyncpa [#allocation4], 1
    %s691 = scalar_lea.sflag [#allocation4], 1
    %692 = vsyncpa %s691, 1
    %693 = vsyncpa [#allocation5], 1
    %s694 = scalar_lea.sflag [#allocation5], 1
    %695 = vsyncpa %s694, 1
    %696 = vsyncpa [#allocation8], 1
    %s697 = scalar_lea.sflag [#allocation8], 1
    %698 = vsyncpa %s697, 1

</llo_original>
